<compile_context>
chip_gen: v5e
topology: v5e:2x2
jax: 0.10.0
libtpu: 0.0.40
codegen_flags: <defaults>
</compile_context>

<pallas_src>
import functools

import jax
import jax.numpy as jnp
import numpy as np
from jax.experimental import pallas as pl
from jax.experimental.pallas import tpu as pltpu

LANE = 128          # TPU lane width (last block dim)
SUBLANE = 8         # sublane granularity (second-to-last block dim)
MAX_TR = 2048       # rows of 128 lanes per grid step (~3 MiB angles / step)
SMALL_BATCH = 4096  # below this the plain-JAX closed form beats kernel launch


# ----------------------------- Pallas kernel --------------------------------
def quantum_layer_kernel(x_ref, c_ref, o_ref):
    # x_ref: (2, TR, 128) angles, batch dense over sublanes AND lanes.
    # c_ref: (9,) f32 coefficients in SMEM.  o_ref: (TR, 128) f32.
    a = x_ref[0]                       # (TR, 128) angle on wire 0
    b = x_ref[1]                       # (TR, 128) angle on wire 1
    ca = jnp.cos(a)
    sa = jnp.sin(a)
    cb = jnp.cos(b)
    sb = jnp.sin(b)
    expz = (c_ref[0]
            + c_ref[1] * ca + c_ref[2] * sa
            + (c_ref[3] + c_ref[5] * ca + c_ref[7] * sa) * cb
            + (c_ref[4] + c_ref[6] * ca + c_ref[8] * sa) * sb)
    o_ref[...] = expz                  # dense, unmasked lane store


# ------------------ plain-JAX glue (batch-independent params) ---------------
_CNOT01 = jnp.array([[1, 0, 0, 0],
                     [0, 1, 0, 0],
                     [0, 0, 0, 1],
                     [0, 0, 1, 0]], dtype=jnp.complex64)  # control 0, target 1
_CNOT10 = jnp.array([[1, 0, 0, 0],
                     [0, 0, 0, 1],
                     [0, 0, 1, 0],
                     [0, 1, 0, 0]], dtype=jnp.complex64)  # control 1, target 0


def _rot(phi, theta, omega):
    # qml.Rot(phi, theta, omega) = RZ(omega) RY(theta) RZ(phi)
    c = jnp.cos(theta / 2)
    s = jnp.sin(theta / 2)
    return jnp.array(
        [[jnp.exp(-1j * (phi + omega) / 2) * c, -jnp.exp(1j * (phi - omega) / 2) * s],
         [jnp.exp(-1j * (phi - omega) / 2) * s,  jnp.exp(1j * (phi + omega) / 2) * c]],
        dtype=jnp.complex64)


def entangling_unitary(q_weights):
    """StronglyEntanglingLayers((3,2,3)) on 2 wires -> fixed 4x4 unitary."""
    U = jnp.eye(4, dtype=jnp.complex64)
    for l in range(q_weights.shape[0]):
        r0 = _rot(q_weights[l, 0, 0], q_weights[l, 0, 1], q_weights[l, 0, 2])
        r1 = _rot(q_weights[l, 1, 0], q_weights[l, 1, 1], q_weights[l, 1, 2])
        # gates applied in order: Rot (x) Rot, CNOT(0,1), CNOT(1,0)  (range r=1)
        layer = _CNOT10 @ _CNOT01 @ jnp.kron(r0, r1)
        U = layer @ U
    return U


def _expz_coefficients(q_weights):
    """Fold circuit + measurement into 9 real coefficients.

    psi0 = D v with v = [ca*cb, ca*sb, sa*cb, sa*sb] (half-angle cos/sin) and
    D = diag(1,-i,-i,-1); <Z0> = v^T Re(D^H U^H Z0 U D) v = v^T M v.  The
    quadratic form is then rewritten via product-to-sum identities in terms of
    {1, cos a, sin a, cos b, sin b} products (full angles).
    """
    U = entangling_unitary(q_weights)                                   # (4,4) c64
    D = jnp.diag(jnp.array([1.0, -1.0j, -1.0j, -1.0], dtype=jnp.complex64))
    Z0 = jnp.diag(jnp.array([1.0, 1.0, -1.0, -1.0], dtype=jnp.complex64))
    Mc = jnp.conj(D).T @ jnp.conj(U).T @ Z0 @ U @ D                     # Hermitian
    M = jnp.real(Mc).astype(jnp.float32)                                # symmetric
    m00, m11, m22, m33 = M[0, 0], M[1, 1], M[2, 2], M[3, 3]
    s01 = M[0, 1] + M[1, 0]
    s02 = M[0, 2] + M[2, 0]
    s03 = M[0, 3] + M[3, 0]
    s12 = M[1, 2] + M[2, 1]
    s13 = M[1, 3] + M[3, 1]
    s23 = M[2, 3] + M[3, 2]
    return jnp.stack([
        (m00 + m11 + m22 + m33) * 0.25,   # e0: 1
        (m00 + m11 - m22 - m33) * 0.25,   # e1: cos a
        (s02 + s13) * 0.25,               # e2: sin a
        (m00 - m11 + m22 - m33) * 0.25,   # e3: cos b
        (s01 + s23) * 0.25,               # e4: sin b
        (m00 - m11 - m22 + m33) * 0.25,   # e5: cos a * cos b
        (s01 - s23) * 0.25,               # e6: cos a * sin b
        (s02 - s13) * 0.25,               # e7: sin a * cos b
        (s03 + s12) * 0.25,               # e8: sin a * sin b
    ]).astype(jnp.float32)


def _expz_closed_form(x, coef):
    """Small-batch fast path: same folded math in plain JAX (fuses with neighbours)."""
    a = x[:, 0].astype(jnp.float32)
    b = x[:, 1].astype(jnp.float32)
    ca, sa = jnp.cos(a), jnp.sin(a)
    cb, sb = jnp.cos(b), jnp.sin(b)
    return (coef[0] + coef[1] * ca + coef[2] * sa
            + (coef[3] + coef[5] * ca + coef[7] * sa) * cb
            + (coef[4] + coef[6] * ca + coef[8] * sa) * sb).astype(jnp.float32)


# ------------------------------- Pallas path ---------------------------------
def _pallas_forward(x, coef):
    B = x.shape[0]
    r_min = pl.cdiv(max(B, 1), LANE)             # rows of 128 samples needed
    if r_min <= MAX_TR:
        n_steps = 1
        tr = max(SUBLANE, pl.cdiv(r_min, SUBLANE) * SUBLANE)
    else:
        n_steps = pl.cdiv(r_min, MAX_TR)
        tr = pl.cdiv(pl.cdiv(r_min, n_steps), SUBLANE) * SUBLANE
    rows = n_steps * tr
    b_pad = rows * LANE

    # TODO(synk): one HBM pass could be saved for huge B if the caller supplies
    # SoA (2, B) angles directly (or via allow_input_fusion); the (B, 2) layout
    # is kept to match the module interface, so transpose+pad here.
    xt = jnp.transpose(x.astype(jnp.float32))                 # (2, B)
    xt = jnp.pad(xt, ((0, 0), (0, b_pad - B))).reshape(2, rows, LANE)

    if n_steps >= 4:
        # memory-bound kernel with many steps: deepen the input pipeline a bit
        in_spec = pl.BlockSpec((2, tr, LANE), lambda i: (0, i, 0),
                               pipeline_mode=pl.Buffered(3))
    else:
        in_spec = pl.BlockSpec((2, tr, LANE), lambda i: (0, i, 0))

    # TODO(synk): on v7x, splitting the grid over the 2 TensorCores needs an
    # explicit CORE_PARALLEL axis or pl.core_map; "parallel" alone does not.
    out = pl.pallas_call(
        quantum_layer_kernel,
        out_shape=jax.ShapeDtypeStruct((rows, LANE), jnp.float32),
        grid_spec=pltpu.PrefetchScalarGridSpec(
            num_scalar_prefetch=0,
            grid=(n_steps,),
            in_specs=[
                in_spec,                                              # angles
                pl.BlockSpec(memory_space=pltpu.MemorySpace.SMEM),    # 9 coefs
            ],
            out_specs=pl.BlockSpec((tr, LANE), lambda i: (i, 0)),
        ),
        compiler_params=pltpu.CompilerParams(
            dimension_semantics=("parallel",)),
    )(xt, coef)
    return out.reshape(b_pad)[:B]


# --------------------------------- wrapper -----------------------------------
@functools.partial(jax.jit, static_argnames=("force_pallas",))
def quantum_layer_forward(x, q_weights, force_pallas=False):
    """x: (B, 2) angles -> (B,) float32 expval(PauliZ(0)) per sample."""
    coef = _expz_coefficients(q_weights)          # (9,) f32, batch-independent
    B = x.shape[0]
    if force_pallas or B >= SMALL_BATCH:
        return _pallas_forward(x, coef)
    # launch-overhead-dominated regime: evaluate folded form in plain JAX
    return _expz_closed_form(x, coef)


# -------------------------- pure-JAX reference -------------------------------
def reference_forward(x, q_weights):
    U = entangling_unitary(q_weights)
    a = x[:, 0]
    b = x[:, 1]
    ca, sa = jnp.cos(a / 2), jnp.sin(a / 2)
    cb, sb = jnp.cos(b / 2), jnp.sin(b / 2)
    psi0 = jnp.stack([ca * cb + 0j, -1j * ca * sb, -1j * sa * cb,
                      -(sa * sb) + 0j], axis=-1).astype(jnp.complex64)   # (B, 4)
    psi = psi0 @ U.T                                                     # (B, 4)
    probs = jnp.abs(psi) ** 2
    return (probs[:, 0] + probs[:, 1] - probs[:, 2] - probs[:, 3]).astype(jnp.float32)


if __name__ == "__main__":
    key = jax.random.PRNGKey(0)
    k_x, k_q = jax.random.split(key, 2)

    B = 16
    x = jax.random.normal(k_x, (B, 2), dtype=jnp.float32)          # 2 angles/sample
    q_weights = 0.01 * jax.random.normal(k_q, (3, 2, 3), dtype=jnp.float32)

    # Exercise the Pallas kernel explicitly (auto-dispatch would pick the
    # plain-JAX fast path at this tiny batch size).
    out = quantum_layer_forward(x, q_weights, force_pallas=True)
    out = jax.block_until_ready(out)

    ref = reference_forward(x, q_weights)
    np.testing.assert_allclose(np.asarray(out), np.asarray(ref), atol=2e-5, rtol=2e-5)

    # Small-batch (non-Pallas) fast path must agree too.
    fast = jax.block_until_ready(quantum_layer_forward(x, q_weights))
    np.testing.assert_allclose(np.asarray(fast), np.asarray(ref), atol=2e-5, rtol=2e-5)

    print("KERNEL_OK")
</pallas_src>

<mosaic_0001>
module attributes {stable_mosaic.version = 11 : i64} {
  func.func @quantum_layer_kernel(%arg0: i32, %arg1: memref<2x8x128xf32, #tpu.memory_space<vmem>>, %arg2: memref<9xf32, #tpu.memory_space<smem>>, %arg3: memref<8x128xf32, #tpu.memory_space<vmem>>) attributes {dimension_semantics = [#tpu.dimension_semantics<parallel>], iteration_bounds = array<i64: 1>, scalar_prefetch = 0 : i64, scratch_operands = 0 : i64, tpu.core_type = #tpu.core_type<tc>, window_params = [{transform_indices = @transform_0, window_bounds = array<i64: 2, 8, 128>}, {transform_indices = @transform_1, window_bounds = array<i64: 9>}, {transform_indices = @transform_2, window_bounds = array<i64: 8, 128>}]} {
    %c0 = arith.constant 0 : index
    %c0_0 = arith.constant 0 : index
    %c0_1 = arith.constant 0 : index
    %0 = vector.load %arg1[%c0, %c0_0, %c0_1] : memref<2x8x128xf32, #tpu.memory_space<vmem>>, vector<1x8x128xf32>
    %1 = vector.shape_cast %0 : vector<1x8x128xf32> to vector<8x128xf32>
    %c1 = arith.constant 1 : index
    %c0_2 = arith.constant 0 : index
    %c0_3 = arith.constant 0 : index
    %2 = vector.load %arg1[%c1, %c0_2, %c0_3] : memref<2x8x128xf32, #tpu.memory_space<vmem>>, vector<1x8x128xf32>
    %3 = vector.shape_cast %2 : vector<1x8x128xf32> to vector<8x128xf32>
    %4 = math.cos %1 : vector<8x128xf32>
    %5 = math.sin %1 : vector<8x128xf32>
    %6 = math.cos %3 : vector<8x128xf32>
    %7 = math.sin %3 : vector<8x128xf32>
    %c0_4 = arith.constant 0 : index
    %8 = memref.load %arg2[%c0_4] : memref<9xf32, #tpu.memory_space<smem>>
    %c1_5 = arith.constant 1 : index
    %9 = memref.load %arg2[%c1_5] : memref<9xf32, #tpu.memory_space<smem>>
    %10 = vector.broadcast %9 : f32 to vector<8x128xf32>
    %11 = arith.mulf %10, %4 : vector<8x128xf32>
    %12 = vector.broadcast %8 : f32 to vector<8x128xf32>
    %13 = arith.addf %12, %11 : vector<8x128xf32>
    %c2 = arith.constant 2 : index
    %14 = memref.load %arg2[%c2] : memref<9xf32, #tpu.memory_space<smem>>
    %15 = vector.broadcast %14 : f32 to vector<8x128xf32>
    %16 = arith.mulf %15, %5 : vector<8x128xf32>
    %17 = arith.addf %13, %16 : vector<8x128xf32>
    %c3 = arith.constant 3 : index
    %18 = memref.load %arg2[%c3] : memref<9xf32, #tpu.memory_space<smem>>
    %c5 = arith.constant 5 : index
    %19 = memref.load %arg2[%c5] : memref<9xf32, #tpu.memory_space<smem>>
    %20 = vector.broadcast %19 : f32 to vector<8x128xf32>
    %21 = arith.mulf %20, %4 : vector<8x128xf32>
    %22 = vector.broadcast %18 : f32 to vector<8x128xf32>
    %23 = arith.addf %22, %21 : vector<8x128xf32>
    %c7 = arith.constant 7 : index
    %24 = memref.load %arg2[%c7] : memref<9xf32, #tpu.memory_space<smem>>
    %25 = vector.broadcast %24 : f32 to vector<8x128xf32>
    %26 = arith.mulf %25, %5 : vector<8x128xf32>
    %27 = arith.addf %23, %26 : vector<8x128xf32>
    %28 = arith.mulf %27, %6 : vector<8x128xf32>
    %29 = arith.addf %17, %28 : vector<8x128xf32>
    %c4 = arith.constant 4 : index
    %30 = memref.load %arg2[%c4] : memref<9xf32, #tpu.memory_space<smem>>
    %c6 = arith.constant 6 : index
    %31 = memref.load %arg2[%c6] : memref<9xf32, #tpu.memory_space<smem>>
    %32 = vector.broadcast %31 : f32 to vector<8x128xf32>
    %33 = arith.mulf %32, %4 : vector<8x128xf32>
    %34 = vector.broadcast %30 : f32 to vector<8x128xf32>
    %35 = arith.addf %34, %33 : vector<8x128xf32>
    %c8 = arith.constant 8 : index
    %36 = memref.load %arg2[%c8] : memref<9xf32, #tpu.memory_space<smem>>
    %37 = vector.broadcast %36 : f32 to vector<8x128xf32>
    %38 = arith.mulf %37, %5 : vector<8x128xf32>
    %39 = arith.addf %35, %38 : vector<8x128xf32>
    %40 = arith.mulf %39, %7 : vector<8x128xf32>
    %41 = arith.addf %29, %40 : vector<8x128xf32>
    %c0_6 = arith.constant 0 : index
    %c0_7 = arith.constant 0 : index
    %42 = vector.load %arg3[%c0_6, %c0_7] : memref<8x128xf32, #tpu.memory_space<vmem>>, vector<8x128xf32>
    tpu.vector_store %arg3[%c0_6, %c0_7], %41 {strides = array<i32>} : memref<8x128xf32, #tpu.memory_space<vmem>>, vector<8x128xf32>,
    return
  }
  func.func @transform_0(%arg0: i32) -> (i32, i32, i32) {
    %c0_i32 = arith.constant 0 : i32
    %c0_i32_0 = arith.constant 0 : i32
    %c0_i32_1 = arith.constant 0 : i32
    return %c0_i32, %arg0, %c0_i32_0 : i32, i32, i32
  }
  func.func @transform_1(%arg0: i32) -> i32 {
    %c0_i32 = arith.constant 0 : i32
    %c0_i32_0 = arith.constant 0 : i32
    return %c0_i32 : i32
  }
  func.func @transform_2(%arg0: i32) -> (i32, i32) {
    %c0_i32 = arith.constant 0 : i32
    %c0_i32_0 = arith.constant 0 : i32
    return %arg0, %c0_i32 : i32, i32
  }
}

</mosaic_0001>

<llo_original>
// kernel: quantum_layer_forward.1
$region0: #{quantum_layer_forward.1}
  #allocation0 [shape = 'u32[]', space=smem, size = 0x4, offset = 0x4, fixed_abs, tag = 'smem constant byte address 0x4 - core index']
  #allocation1 [shape = 'u32[72,128]{1,0:T(1,128)}', space=vmem, size = 0x9000, scoped, tag = 'internal scratch']
  %s0 = inlined_call_operand.vmem [shape: f32[2,8,128], index: 0, kind: input, shape index: {}]
  %s1 = inlined_call_operand.vmem [shape: f32[9], index: 1, kind: input, shape index: {}]
  %s2 = inlined_call_operand.vmem [shape: f32[8,128], index: 2, kind: output, shape index: {}]
  %s3 = sld [smem:[#allocation0]]
  $region22: #{quantum_layer_forward.1} parent=0
    _
  %s5 = ssub.s32 1, %s3
  %s6 = scalar_select 0, %s5, %s3
  $region1: #{quantum_layer_forward.1} parent=0
    #allocation2 [shape = 'u8[512]{0}', space=smem, size = 0x200, scoped, tag = 'input window, operand 1, single buffered']
    #allocation3 [shape = 's32[1]{0}', space=sflag, size = 0x4, scoped, tag = 'scoped memory for quantum_layer_forward.1']
    %7 = vsyncpa [#allocation3], 0
    // Predicated region
    $region2: #{quantum_layer_forward.1} parent=1 // pred_check
      _
    $region3: #{quantum_layer_forward.1} parent=1 // pred_check_branch
      %9 = sbr.rel (0) target = $region5
    $region4: #{quantum_layer_forward.1} parent=1 // pred_region
      _
    $region5: #{quantum_layer_forward.1} parent=1 // pred_fallthru
      _
    // Predicated region
    $region6: #{quantum_layer_forward.1} parent=1 // pred_check
      _
    $region7: #{quantum_layer_forward.1} parent=1 // pred_check_branch
      %11 = sbr.rel (0) target = $region9
    $region8: #{quantum_layer_forward.1} parent=1 // pred_region
      %13 = vsyncadd [#allocation3], 0
      %s15 = sshll.u32 %s1, 4
      %s16 = int_to_ptr.vmem [resolvable:$true] %s15
      %18 = dma.vmem_to_smem %s16, 16, [#allocation2], [#allocation3]
    $region9: #{quantum_layer_forward.1} parent=1 // pred_fallthru
      _
    // Predicated region
    $region10: #{quantum_layer_forward.1} parent=1 // pred_check
      _
    $region11: #{quantum_layer_forward.1} parent=1 // pred_check_branch
      %20 = sbr.rel (0) target = $region13
    $region12: #{quantum_layer_forward.1} parent=1 // pred_region
      %22 = dma.done [#allocation3], 16
    $region13: #{quantum_layer_forward.1} parent=1 // pred_fallthru
      _
    %23 = sfence
    %v24 = vld [vmem:[%s0] sm:$0xff]
    %s25 = scalar_lea.vmem %s0, 8
    %v26 = vld [vmem:[%s25] sm:$0xff]
    %v27 = vand.u32 2147483647, %v24
    %vm28 = vcmp.le.f32.partialorder %v27, 0.7853982
    %vm29 = vcmp.lt.s32.totalorder %v24, 0
    %v30 = vand.u32 %v24, 2139095040
    %v31 = vshrl.u32 %v30, 23
    %v32 = vsub.s32 %v31, 127
    %v33 = vand.u32 2147483647, %v24
    %v34 = vand.u32 %v33, 8388607
    %v35 = vor.u32 %v34, 8388608
    %v36 = vsub.s32 0, %v35
    %v37 = vadd.s32 %v32, 1
    %vm38 = vcmp.gt.s32.totalorder %v37, 0
    %v39 = vsel %vm38, %v37, 0
    %v40 = vshrl.u32 %v39, 5
    %v41 = vand.u32 %v39, 31
    %v42 = vsub.s32 32, %v41
    %v43 = vshrl.u32 683565275, %v42
    %v44 = vshll.u32 683565275, %v41
    %v45 = vshrl.u32 2475754826, %v42
    %v46 = vor.u32 %v44, %v45
    %v47 = vshll.u32 2475754826, %v41
    %v48 = vshrl.u32 2131351028, %v42
    %v49 = vor.u32 %v47, %v48
    %v50 = vshll.u32 2131351028, %v41
    %v51 = vshrl.u32 2102212464, %v42
    %v52 = vor.u32 %v50, %v51
    %v53 = vshll.u32 2102212464, %v41
    %v54 = vshrl.u32 920167782, %v42
    %v55 = vor.u32 %v53, %v54
    %v56 = vshll.u32 920167782, %v41
    %v57 = vshrl.u32 1326507024, %v42
    %v58 = vor.u32 %v56, %v57
    %vm59 = vcmp.lt.s32.totalorder %v40, 1
    %vm60 = vcmp.lt.s32.totalorder %v40, 2
    %vm61 = vcmp.lt.s32.totalorder %v40, 3
    %vm62 = vcmp.lt.s32.totalorder %v40, 4
    %v63 = vsel %vm59, %v43, %v46
    %v64 = vsel %vm62, %v52, 2102212464
    %v65 = vsel %vm61, %v49, %v64
    %v66 = vsel %vm60, %v63, %v65
    %v67 = vsel %vm59, %v46, %v49
    %v68 = vsel %vm62, %v55, 920167782
    %v69 = vsel %vm61, %v52, %v68
    %v70 = vsel %vm60, %v67, %v69
    %v71 = vsel %vm59, %v49, %v52
    %v72 = vsel %vm62, %v58, 1326507024
    %v73 = vsel %vm61, %v55, %v72
    %v74 = vsel %vm60, %v71, %v73
    %v75 = vshll.u32 %v35, 8
    %v76 = vand.u32 %v75, 65535
    %v77 = vshrl.u32 %v75, 16
    %v78 = vand.u32 %v74, 65535
    %v79 = vshrl.u32 %v74, 16
    %v80 = vmul.u32 %v76, %v78
    %v81 = vmul.u32 %v76, %v79
    %v82 = vmul.u32 %v77, %v78
    %v83 = vmul.u32 %v77, %v79
    %v84 = vshll.u32 %v81, 16
    %v85 = vshrl.u32 %v81, 16
    %v86 = vshll.u32 %v82, 16
    %v87 = vshrl.u32 %v82, 16
    %vm88 = vc.u32 %v80, %v84
    %v89 = vsel %vm88, 1, 0
    %v90 = vadd.s32 %v80, %v84
    %v91 = vadd.s32 %v83, %v89
    %vm92 = vc.u32 %v90, %v86
    %v93 = vsel %vm92, 1, 0
    %v94 = vadd.s32 %v90, %v86
    %v95 = vadd.s32 %v91, %v93
    %v96 = vadd.s32 %v95, %v85
    %v97 = vadd.s32 %v96, %v87
    %v98 = vand.u32 %v75, 65535
    %v99 = vshrl.u32 %v75, 16
    %v100 = vand.u32 %v70, 65535
    %v101 = vshrl.u32 %v70, 16
    %v102 = vmul.u32 %v98, %v100
    %v103 = vmul.u32 %v98, %v101
    %v104 = vmul.u32 %v99, %v100
    %v105 = vmul.u32 %v99, %v101
    %v106 = vshll.u32 %v103, 16
    %v107 = vshrl.u32 %v103, 16
    %v108 = vshll.u32 %v104, 16
    %v109 = vshrl.u32 %v104, 16
    %vm110 = vc.u32 %v102, %v106
    %v111 = vsel %vm110, 1, 0
    %v112 = vadd.s32 %v102, %v106
    %v113 = vadd.s32 %v105, %v111
    %vm114 = vc.u32 %v112, %v108
    %v115 = vsel %vm114, 1, 0
    %v116 = vadd.s32 %v112, %v108
    %v117 = vadd.s32 %v113, %v115
    %v118 = vadd.s32 %v117, %v107
    %v119 = vadd.s32 %v118, %v109
    %v120 = vmul.u32 %v75, %v66
    %v121 = vadd.s32 %v97, %v116
    %vm122 = vc.u32 %v97, %v116
    %v123 = vadd.s32 %v119, 1
    %v124 = vsel %vm122, %v123, %v119
    %v125 = vadd.s32 %v120, %v124
    %v126 = vadd.s32 %v125, 536870912
    %v127 = vshrl.u32 %v126, 30
    %v128 = vshll.u32 %v127, 30
    %v129 = vsub.s32 %v125, %v128
    %vm130 = vcmp.lt.s32.totalorder %v129, 0
    %v131 = vsub.s32 0, %v129
    %v132 = vsel %vm130, %v131, %v129
    %v133 = vclz %v132
    %v134 = vsub.s32 %v133, 2
    %vm135 = vcmp.gt.s32.totalorder 0, %v134
    %v136 = vsel %vm135, 0, %v134
    %v137 = vsub.s32 32, %v136
    %v138 = vshll.u32 %v129, %v136
    %v139 = vshrl.u32 %v121, %v137
    %v140 = vor.u32 %v138, %v139
    %v141 = vsub.s32 4294967266, %v136
    %v142 = vadd.s32 %v141, 127
    %v143 = vshll.u32 %v142, 23
    %v144 = vor.u32 4788187, %v143
    %v145 = vand.u32 2147483647, %v144
    %v147 = vcvt.s32.f32 %v140
    %v148 = vmul.f32 %v147, %v145
    %v149 = vxor.u32 %v148, 2147483648
    %v150 = vsel %vm29, %v149, %v148
    %v151 = vsub.s32 4, %v127
    %v152 = vsel %vm29, %v151, %v127
    %v153 = vsel %vm28, %v24, %v150
    %v154 = vsel %vm28, 0, %v152
    %v155 = vmul.f32 %v153, %v153
    %v156 = vmul.f32 %v155, -0.001358992
    %v157 = vadd.f32 %v156, 0.041655596
    %v158 = vmul.f32 %v155, %v157
    %v159 = vadd.f32 %v158, -0.4999988
    %v160 = vmul.f32 %v155, %v159
    %v161 = vadd.f32 1.0, %v160
    %v162 = vmul.f32 %v153, %v153
    %v163 = vmul.f32 %v162, -0.00019511016
    %v164 = vadd.f32 %v163, 0.008332121
    %v165 = vmul.f32 %v162, %v164
    %v166 = vadd.f32 %v165, -0.16666654
    %v167 = vmul.f32 %v162, %v166
    %v168 = vadd.f32 %v167, 1.0
    %v169 = vmul.f32 %v168, %v153
    %vm170 = vweird.f32 %v24
    %v171 = vand.u32 %v154, 3
    %vm172 = vcmp.lt.s32.totalorder %v171, 2
    %vm173 = vcmp.eq.s32.totalorder %v171, 0
    %v174 = vxor.u32 %v169, 2147483648
    %v175 = vsel %vm173, %v161, %v174
    %vm176 = vcmp.eq.s32.totalorder %v171, 2
    %v177 = vxor.u32 %v161, 2147483648
    %v178 = vsel %vm176, %v177, %v169
    %v179 = vsel %vm172, %v175, %v178
    %v180 = vsel %vm170, nan, %v179
    %v181 = vand.u32 2147483647, %v24
    %vm182 = vcmp.le.f32.partialorder %v181, 0.7853982
    %vm183 = vcmp.lt.s32.totalorder %v24, 0
    %v184 = vand.u32 %v24, 2139095040
    %v185 = vshrl.u32 %v184, 23
    %v186 = vsub.s32 %v185, 127
    %v187 = vand.u32 2147483647, %v24
    %v188 = vand.u32 %v187, 8388607
    %v189 = vor.u32 %v188, 8388608
    %v190 = vsub.s32 0, %v189
    %v191 = vadd.s32 %v186, 1
    %vm192 = vcmp.gt.s32.totalorder %v191, 0
    %v193 = vsel %vm192, %v191, 0
    %v194 = vshrl.u32 %v193, 5
    %v195 = vand.u32 %v193, 31
    %v196 = vsub.s32 32, %v195
    %v197 = vshrl.u32 683565275, %v196
    %v198 = vshll.u32 683565275, %v195
    %v199 = vshrl.u32 2475754826, %v196
    %v200 = vor.u32 %v198, %v199
    %v201 = vshll.u32 2475754826, %v195
    %v202 = vshrl.u32 2131351028, %v196
    %v203 = vor.u32 %v201, %v202
    %v204 = vshll.u32 2131351028, %v195
    %v205 = vshrl.u32 2102212464, %v196
    %v206 = vor.u32 %v204, %v205
    %v207 = vshll.u32 2102212464, %v195
    %v208 = vshrl.u32 920167782, %v196
    %v209 = vor.u32 %v207, %v208
    %v210 = vshll.u32 920167782, %v195
    %v211 = vshrl.u32 1326507024, %v196
    %v212 = vor.u32 %v210, %v211
    %vm213 = vcmp.lt.s32.totalorder %v194, 1
    %vm214 = vcmp.lt.s32.totalorder %v194, 2
    %vm215 = vcmp.lt.s32.totalorder %v194, 3
    %vm216 = vcmp.lt.s32.totalorder %v194, 4
    %v217 = vsel %vm213, %v197, %v200
    %v218 = vsel %vm216, %v206, 2102212464
    %v219 = vsel %vm215, %v203, %v218
    %v220 = vsel %vm214, %v217, %v219
    %v221 = vsel %vm213, %v200, %v203
    %v222 = vsel %vm216, %v209, 920167782
    %v223 = vsel %vm215, %v206, %v222
    %v224 = vsel %vm214, %v221, %v223
    %v225 = vsel %vm213, %v203, %v206
    %v226 = vsel %vm216, %v212, 1326507024
    %v227 = vsel %vm215, %v209, %v226
    %v228 = vsel %vm214, %v225, %v227
    %v229 = vshll.u32 %v189, 8
    %v230 = vand.u32 %v229, 65535
    %v231 = vshrl.u32 %v229, 16
    %v232 = vand.u32 %v228, 65535
    %v233 = vshrl.u32 %v228, 16
    %v234 = vmul.u32 %v230, %v232
    %v235 = vmul.u32 %v230, %v233
    %v236 = vmul.u32 %v231, %v232
    %v237 = vmul.u32 %v231, %v233
    %v238 = vshll.u32 %v235, 16
    %v239 = vshrl.u32 %v235, 16
    %v240 = vshll.u32 %v236, 16
    %v241 = vshrl.u32 %v236, 16
    %vm242 = vc.u32 %v234, %v238
    %v243 = vsel %vm242, 1, 0
    %v244 = vadd.s32 %v234, %v238
    %v245 = vadd.s32 %v237, %v243
    %vm246 = vc.u32 %v244, %v240
    %v247 = vsel %vm246, 1, 0
    %v248 = vadd.s32 %v244, %v240
    %v249 = vadd.s32 %v245, %v247
    %v250 = vadd.s32 %v249, %v239
    %v251 = vadd.s32 %v250, %v241
    %v252 = vand.u32 %v229, 65535
    %v253 = vshrl.u32 %v229, 16
    %v254 = vand.u32 %v224, 65535
    %v255 = vshrl.u32 %v224, 16
    %v256 = vmul.u32 %v252, %v254
    %v257 = vmul.u32 %v252, %v255
    %v258 = vmul.u32 %v253, %v254
    %v259 = vmul.u32 %v253, %v255
    %v260 = vshll.u32 %v257, 16
    %v261 = vshrl.u32 %v257, 16
    %v262 = vshll.u32 %v258, 16
    %v263 = vshrl.u32 %v258, 16
    %vm264 = vc.u32 %v256, %v260
    %v265 = vsel %vm264, 1, 0
    %v266 = vadd.s32 %v256, %v260
    %v267 = vadd.s32 %v259, %v265
    %vm268 = vc.u32 %v266, %v262
    %v269 = vsel %vm268, 1, 0
    %v270 = vadd.s32 %v266, %v262
    %v271 = vadd.s32 %v267, %v269
    %v272 = vadd.s32 %v271, %v261
    %v273 = vadd.s32 %v272, %v263
    %v274 = vmul.u32 %v229, %v220
    %v275 = vadd.s32 %v251, %v270
    %vm276 = vc.u32 %v251, %v270
    %v277 = vadd.s32 %v273, 1
    %v278 = vsel %vm276, %v277, %v273
    %v279 = vadd.s32 %v274, %v278
    %v280 = vadd.s32 %v279, 536870912
    %v281 = vshrl.u32 %v280, 30
    %v282 = vshll.u32 %v281, 30
    %v283 = vsub.s32 %v279, %v282
    %vm284 = vcmp.lt.s32.totalorder %v283, 0
    %v285 = vsub.s32 0, %v283
    %v286 = vsel %vm284, %v285, %v283
    %v287 = vclz %v286
    %v288 = vsub.s32 %v287, 2
    %vm289 = vcmp.gt.s32.totalorder 0, %v288
    %v290 = vsel %vm289, 0, %v288
    %v291 = vsub.s32 32, %v290
    %v292 = vshll.u32 %v283, %v290
    %v293 = vshrl.u32 %v275, %v291
    %v294 = vor.u32 %v292, %v293
    %v295 = vsub.s32 4294967266, %v290
    %v296 = vadd.s32 %v295, 127
    %v297 = vshll.u32 %v296, 23
    %v298 = vor.u32 4788187, %v297
    %v299 = vand.u32 2147483647, %v298
    %v301 = vcvt.s32.f32 %v294
    %v302 = vmul.f32 %v301, %v299
    %v303 = vxor.u32 %v302, 2147483648
    %v304 = vsel %vm183, %v303, %v302
    %v305 = vsub.s32 4, %v281
    %v306 = vsel %vm183, %v305, %v281
    %v307 = vsel %vm182, %v24, %v304
    %v308 = vsel %vm182, 0, %v306
    %v309 = vmul.f32 %v307, %v307
    %v310 = vmul.f32 %v309, -0.001358992
    %v311 = vadd.f32 %v310, 0.041655596
    %v312 = vmul.f32 %v309, %v311
    %v313 = vadd.f32 %v312, -0.4999988
    %v314 = vmul.f32 %v309, %v313
    %v315 = vadd.f32 1.0, %v314
    %v316 = vmul.f32 %v307, %v307
    %v317 = vmul.f32 %v316, -0.00019511016
    %v318 = vadd.f32 %v317, 0.008332121
    %v319 = vmul.f32 %v316, %v318
    %v320 = vadd.f32 %v319, -0.16666654
    %v321 = vmul.f32 %v316, %v320
    %v322 = vadd.f32 %v321, 1.0
    %v323 = vmul.f32 %v322, %v307
    %vm324 = vweird.f32 %v24
    %v325 = vadd.s32 %v308, 3
    %v326 = vand.u32 %v325, 3
    %vm327 = vcmp.lt.s32.totalorder %v326, 2
    %vm328 = vcmp.eq.s32.totalorder %v326, 0
    %v329 = vxor.u32 %v323, 2147483648
    %v330 = vsel %vm328, %v315, %v329
    %vm331 = vcmp.eq.s32.totalorder %v326, 2
    %v332 = vxor.u32 %v315, 2147483648
    %v333 = vsel %vm331, %v332, %v323
    %v334 = vsel %vm327, %v330, %v333
    %v335 = vsel %vm324, nan, %v334
    %v336 = vand.u32 2147483647, %v26
    %vm337 = vcmp.le.f32.partialorder %v336, 0.7853982
    %vm338 = vcmp.lt.s32.totalorder %v26, 0
    %v339 = vand.u32 %v26, 2139095040
    %v340 = vshrl.u32 %v339, 23
    %v341 = vsub.s32 %v340, 127
    %v342 = vand.u32 2147483647, %v26
    %v343 = vand.u32 %v342, 8388607
    %v344 = vor.u32 %v343, 8388608
    %v345 = vsub.s32 0, %v344
    %v346 = vadd.s32 %v341, 1
    %vm347 = vcmp.gt.s32.totalorder %v346, 0
    %v348 = vsel %vm347, %v346, 0
    %v349 = vshrl.u32 %v348, 5
    %v350 = vand.u32 %v348, 31
    %v351 = vsub.s32 32, %v350
    %v352 = vshrl.u32 683565275, %v351
    %v353 = vshll.u32 683565275, %v350
    %v354 = vshrl.u32 2475754826, %v351
    %v355 = vor.u32 %v353, %v354
    %v356 = vshll.u32 2475754826, %v350
    %v357 = vshrl.u32 2131351028, %v351
    %v358 = vor.u32 %v356, %v357
    %v359 = vshll.u32 2131351028, %v350
    %v360 = vshrl.u32 2102212464, %v351
    %v361 = vor.u32 %v359, %v360
    %v362 = vshll.u32 2102212464, %v350
    %v363 = vshrl.u32 920167782, %v351
    %v364 = vor.u32 %v362, %v363
    %v365 = vshll.u32 920167782, %v350
    %v366 = vshrl.u32 1326507024, %v351
    %v367 = vor.u32 %v365, %v366
    %vm368 = vcmp.lt.s32.totalorder %v349, 1
    %vm369 = vcmp.lt.s32.totalorder %v349, 2
    %vm370 = vcmp.lt.s32.totalorder %v349, 3
    %vm371 = vcmp.lt.s32.totalorder %v349, 4
    %v372 = vsel %vm368, %v352, %v355
    %v373 = vsel %vm371, %v361, 2102212464
    %v374 = vsel %vm370, %v358, %v373
    %v375 = vsel %vm369, %v372, %v374
    %v376 = vsel %vm368, %v355, %v358
    %v377 = vsel %vm371, %v364, 920167782
    %v378 = vsel %vm370, %v361, %v377
    %v379 = vsel %vm369, %v376, %v378
    %v380 = vsel %vm368, %v358, %v361
    %v381 = vsel %vm371, %v367, 1326507024
    %v382 = vsel %vm370, %v364, %v381
    %v383 = vsel %vm369, %v380, %v382
    %v384 = vshll.u32 %v344, 8
    %v385 = vand.u32 %v384, 65535
    %v386 = vshrl.u32 %v384, 16
    %v387 = vand.u32 %v383, 65535
    %v388 = vshrl.u32 %v383, 16
    %v389 = vmul.u32 %v385, %v387
    %v390 = vmul.u32 %v385, %v388
    %v391 = vmul.u32 %v386, %v387
    %v392 = vmul.u32 %v386, %v388
    %v393 = vshll.u32 %v390, 16
    %v394 = vshrl.u32 %v390, 16
    %v395 = vshll.u32 %v391, 16
    %v396 = vshrl.u32 %v391, 16
    %vm397 = vc.u32 %v389, %v393
    %v398 = vsel %vm397, 1, 0
    %v399 = vadd.s32 %v389, %v393
    %v400 = vadd.s32 %v392, %v398
    %vm401 = vc.u32 %v399, %v395
    %v402 = vsel %vm401, 1, 0
    %v403 = vadd.s32 %v399, %v395
    %v404 = vadd.s32 %v400, %v402
    %v405 = vadd.s32 %v404, %v394
    %v406 = vadd.s32 %v405, %v396
    %v407 = vand.u32 %v384, 65535
    %v408 = vshrl.u32 %v384, 16
    %v409 = vand.u32 %v379, 65535
    %v410 = vshrl.u32 %v379, 16
    %v411 = vmul.u32 %v407, %v409
    %v412 = vmul.u32 %v407, %v410
    %v413 = vmul.u32 %v408, %v409
    %v414 = vmul.u32 %v408, %v410
    %v415 = vshll.u32 %v412, 16
    %v416 = vshrl.u32 %v412, 16
    %v417 = vshll.u32 %v413, 16
    %v418 = vshrl.u32 %v413, 16
    %vm419 = vc.u32 %v411, %v415
    %v420 = vsel %vm419, 1, 0
    %v421 = vadd.s32 %v411, %v415
    %v422 = vadd.s32 %v414, %v420
    %vm423 = vc.u32 %v421, %v417
    %v424 = vsel %vm423, 1, 0
    %v425 = vadd.s32 %v421, %v417
    %v426 = vadd.s32 %v422, %v424
    %v427 = vadd.s32 %v426, %v416
    %v428 = vadd.s32 %v427, %v418
    %v429 = vmul.u32 %v384, %v375
    %v430 = vadd.s32 %v406, %v425
    %vm431 = vc.u32 %v406, %v425
    %v432 = vadd.s32 %v428, 1
    %v433 = vsel %vm431, %v432, %v428
    %v434 = vadd.s32 %v429, %v433
    %v435 = vadd.s32 %v434, 536870912
    %v436 = vshrl.u32 %v435, 30
    %v437 = vshll.u32 %v436, 30
    %v438 = vsub.s32 %v434, %v437
    %vm439 = vcmp.lt.s32.totalorder %v438, 0
    %v440 = vsub.s32 0, %v438
    %v441 = vsel %vm439, %v440, %v438
    %v442 = vclz %v441
    %v443 = vsub.s32 %v442, 2
    %vm444 = vcmp.gt.s32.totalorder 0, %v443
    %v445 = vsel %vm444, 0, %v443
    %v446 = vsub.s32 32, %v445
    %v447 = vshll.u32 %v438, %v445
    %v448 = vshrl.u32 %v430, %v446
    %v449 = vor.u32 %v447, %v448
    %v450 = vsub.s32 4294967266, %v445
    %v451 = vadd.s32 %v450, 127
    %v452 = vshll.u32 %v451, 23
    %v453 = vor.u32 4788187, %v452
    %v454 = vand.u32 2147483647, %v453
    %v456 = vcvt.s32.f32 %v449
    %v457 = vmul.f32 %v456, %v454
    %v458 = vxor.u32 %v457, 2147483648
    %v459 = vsel %vm338, %v458, %v457
    %v460 = vsub.s32 4, %v436
    %v461 = vsel %vm338, %v460, %v436
    %v462 = vsel %vm337, %v26, %v459
    %v463 = vsel %vm337, 0, %v461
    %v464 = vmul.f32 %v462, %v462
    %v465 = vmul.f32 %v464, -0.001358992
    %v466 = vadd.f32 %v465, 0.041655596
    %v467 = vmul.f32 %v464, %v466
    %v468 = vadd.f32 %v467, -0.4999988
    %v469 = vmul.f32 %v464, %v468
    %v470 = vadd.f32 1.0, %v469
    %v471 = vmul.f32 %v462, %v462
    %v472 = vmul.f32 %v471, -0.00019511016
    %v473 = vadd.f32 %v472, 0.008332121
    %v474 = vmul.f32 %v471, %v473
    %v475 = vadd.f32 %v474, -0.16666654
    %v476 = vmul.f32 %v471, %v475
    %v477 = vadd.f32 %v476, 1.0
    %v478 = vmul.f32 %v477, %v462
    %vm479 = vweird.f32 %v26
    %v480 = vand.u32 %v463, 3
    %vm481 = vcmp.lt.s32.totalorder %v480, 2
    %vm482 = vcmp.eq.s32.totalorder %v480, 0
    %v483 = vxor.u32 %v478, 2147483648
    %v484 = vsel %vm482, %v470, %v483
    %vm485 = vcmp.eq.s32.totalorder %v480, 2
    %v486 = vxor.u32 %v470, 2147483648
    %v487 = vsel %vm485, %v486, %v478
    %v488 = vsel %vm481, %v484, %v487
    %v489 = vsel %vm479, nan, %v488
    %v490 = vand.u32 2147483647, %v26
    %vm491 = vcmp.le.f32.partialorder %v490, 0.7853982
    %vm492 = vcmp.lt.s32.totalorder %v26, 0
    %v493 = vand.u32 %v26, 2139095040
    %v494 = vshrl.u32 %v493, 23
    %v495 = vsub.s32 %v494, 127
    %v496 = vand.u32 2147483647, %v26
    %v497 = vand.u32 %v496, 8388607
    %v498 = vor.u32 %v497, 8388608
    %v499 = vsub.s32 0, %v498
    %v500 = vadd.s32 %v495, 1
    %vm501 = vcmp.gt.s32.totalorder %v500, 0
    %v502 = vsel %vm501, %v500, 0
    %v503 = vshrl.u32 %v502, 5
    %v504 = vand.u32 %v502, 31
    %v505 = vsub.s32 32, %v504
    %v506 = vshrl.u32 683565275, %v505
    %v507 = vshll.u32 683565275, %v504
    %v508 = vshrl.u32 2475754826, %v505
    %v509 = vor.u32 %v507, %v508
    %v510 = vshll.u32 2475754826, %v504
    %v511 = vshrl.u32 2131351028, %v505
    %v512 = vor.u32 %v510, %v511
    %v513 = vshll.u32 2131351028, %v504
    %v514 = vshrl.u32 2102212464, %v505
    %v515 = vor.u32 %v513, %v514
    %v516 = vshll.u32 2102212464, %v504
    %v517 = vshrl.u32 920167782, %v505
    %v518 = vor.u32 %v516, %v517
    %v519 = vshll.u32 920167782, %v504
    %v520 = vshrl.u32 1326507024, %v505
    %v521 = vor.u32 %v519, %v520
    %vm522 = vcmp.lt.s32.totalorder %v503, 1
    %vm523 = vcmp.lt.s32.totalorder %v503, 2
    %vm524 = vcmp.lt.s32.totalorder %v503, 3
    %vm525 = vcmp.lt.s32.totalorder %v503, 4
    %v526 = vsel %vm522, %v506, %v509
    %v527 = vsel %vm525, %v515, 2102212464
    %v528 = vsel %vm524, %v512, %v527
    %v529 = vsel %vm523, %v526, %v528
    %v530 = vsel %vm522, %v509, %v512
    %v531 = vsel %vm525, %v518, 920167782
    %v532 = vsel %vm524, %v515, %v531
    %v533 = vsel %vm523, %v530, %v532
    %v534 = vsel %vm522, %v512, %v515
    %v535 = vsel %vm525, %v521, 1326507024
    %v536 = vsel %vm524, %v518, %v535
    %v537 = vsel %vm523, %v534, %v536
    %v538 = vshll.u32 %v498, 8
    %v539 = vand.u32 %v538, 65535
    %v540 = vshrl.u32 %v538, 16
    %v541 = vand.u32 %v537, 65535
    %v542 = vshrl.u32 %v537, 16
    %v543 = vmul.u32 %v539, %v541
    %v544 = vmul.u32 %v539, %v542
    %v545 = vmul.u32 %v540, %v541
    %v546 = vmul.u32 %v540, %v542
    %v547 = vshll.u32 %v544, 16
    %v548 = vshrl.u32 %v544, 16
    %v549 = vshll.u32 %v545, 16
    %v550 = vshrl.u32 %v545, 16
    %vm551 = vc.u32 %v543, %v547
    %v552 = vsel %vm551, 1, 0
    %v553 = vadd.s32 %v543, %v547
    %v554 = vadd.s32 %v546, %v552
    %vm555 = vc.u32 %v553, %v549
    %v556 = vsel %vm555, 1, 0
    %v557 = vadd.s32 %v553, %v549
    %v558 = vadd.s32 %v554, %v556
    %v559 = vadd.s32 %v558, %v548
    %v560 = vadd.s32 %v559, %v550
    %v561 = vand.u32 %v538, 65535
    %v562 = vshrl.u32 %v538, 16
    %v563 = vand.u32 %v533, 65535
    %v564 = vshrl.u32 %v533, 16
    %v565 = vmul.u32 %v561, %v563
    %v566 = vmul.u32 %v561, %v564
    %v567 = vmul.u32 %v562, %v563
    %v568 = vmul.u32 %v562, %v564
    %v569 = vshll.u32 %v566, 16
    %v570 = vshrl.u32 %v566, 16
    %v571 = vshll.u32 %v567, 16
    %v572 = vshrl.u32 %v567, 16
    %vm573 = vc.u32 %v565, %v569
    %v574 = vsel %vm573, 1, 0
    %v575 = vadd.s32 %v565, %v569
    %v576 = vadd.s32 %v568, %v574
    %vm577 = vc.u32 %v575, %v571
    %v578 = vsel %vm577, 1, 0
    %v579 = vadd.s32 %v575, %v571
    %v580 = vadd.s32 %v576, %v578
    %v581 = vadd.s32 %v580, %v570
    %v582 = vadd.s32 %v581, %v572
    %v583 = vmul.u32 %v538, %v529
    %v584 = vadd.s32 %v560, %v579
    %vm585 = vc.u32 %v560, %v579
    %v586 = vadd.s32 %v582, 1
    %v587 = vsel %vm585, %v586, %v582
    %v588 = vadd.s32 %v583, %v587
    %v589 = vadd.s32 %v588, 536870912
    %v590 = vshrl.u32 %v589, 30
    %v591 = vshll.u32 %v590, 30
    %v592 = vsub.s32 %v588, %v591
    %vm593 = vcmp.lt.s32.totalorder %v592, 0
    %v594 = vsub.s32 0, %v592
    %v595 = vsel %vm593, %v594, %v592
    %v596 = vclz %v595
    %v597 = vsub.s32 %v596, 2
    %vm598 = vcmp.gt.s32.totalorder 0, %v597
    %v599 = vsel %vm598, 0, %v597
    %v600 = vsub.s32 32, %v599
    %v601 = vshll.u32 %v592, %v599
    %v602 = vshrl.u32 %v584, %v600
    %v603 = vor.u32 %v601, %v602
    %v604 = vsub.s32 4294967266, %v599
    %v605 = vadd.s32 %v604, 127
    %v606 = vshll.u32 %v605, 23
    %v607 = vor.u32 4788187, %v606
    %v608 = vand.u32 2147483647, %v607
    %v610 = vcvt.s32.f32 %v603
    %v611 = vmul.f32 %v610, %v608
    %v612 = vxor.u32 %v611, 2147483648
    %v613 = vsel %vm492, %v612, %v611
    %v614 = vsub.s32 4, %v590
    %v615 = vsel %vm492, %v614, %v590
    %v616 = vsel %vm491, %v26, %v613
    %v617 = vsel %vm491, 0, %v615
    %v618 = vmul.f32 %v616, %v616
    %v619 = vmul.f32 %v618, -0.001358992
    %v620 = vadd.f32 %v619, 0.041655596
    %v621 = vmul.f32 %v618, %v620
    %v622 = vadd.f32 %v621, -0.4999988
    %v623 = vmul.f32 %v618, %v622
    %v624 = vadd.f32 1.0, %v623
    %v625 = vmul.f32 %v616, %v616
    %v626 = vmul.f32 %v625, -0.00019511016
    %v627 = vadd.f32 %v626, 0.008332121
    %v628 = vmul.f32 %v625, %v627
    %v629 = vadd.f32 %v628, -0.16666654
    %v630 = vmul.f32 %v625, %v629
    %v631 = vadd.f32 %v630, 1.0
    %v632 = vmul.f32 %v631, %v616
    %vm633 = vweird.f32 %v26
    %v634 = vadd.s32 %v617, 3
    %v635 = vand.u32 %v634, 3
    %vm636 = vcmp.lt.s32.totalorder %v635, 2
    %vm637 = vcmp.eq.s32.totalorder %v635, 0
    %v638 = vxor.u32 %v632, 2147483648
    %v639 = vsel %vm637, %v624, %v638
    %vm640 = vcmp.eq.s32.totalorder %v635, 2
    %v641 = vxor.u32 %v624, 2147483648
    %v642 = vsel %vm640, %v641, %v632
    %v643 = vsel %vm636, %v639, %v642
    %v644 = vsel %vm633, nan, %v643
    %s645 = sld [smem:[#allocation2]]
    %s646 = sld [smem:[#allocation2 + $0x1]]
    %v647 = vstv %s646
    %v648 = vmul.f32 %v647, %v180
    %v649 = vstv %s645
    %v650 = vadd.f32 %v649, %v648
    %s651 = sld [smem:[#allocation2 + $0x2]]
    %v652 = vstv %s651
    %v653 = vmul.f32 %v652, %v335
    %v654 = vadd.f32 %v650, %v653
    %s655 = sld [smem:[#allocation2 + $0x3]]
    %s656 = sld [smem:[#allocation2 + $0x5]]
    %v657 = vstv %s656
    %v658 = vmul.f32 %v657, %v180
    %v659 = vstv %s655
    %v660 = vadd.f32 %v659, %v658
    %s661 = sld [smem:[#allocation2 + $0x7]]
    %v662 = vstv %s661
    %v663 = vmul.f32 %v662, %v335
    %v664 = vadd.f32 %v660, %v663
    %v665 = vmul.f32 %v664, %v489
    %v666 = vadd.f32 %v654, %v665
    %s667 = sld [smem:[#allocation2 + $0x4]]
    %s668 = sld [smem:[#allocation2 + $0x6]]
    %v669 = vstv %s668
    %v670 = vmul.f32 %v669, %v180
    %v671 = vstv %s667
    %v672 = vadd.f32 %v671, %v670
    %s673 = sld [smem:[#allocation2 + $0x8]]
    %v674 = vstv %s673
    %v675 = vmul.f32 %v674, %v335
    %v676 = vadd.f32 %v672, %v675
    %v677 = vmul.f32 %v676, %v644
    %v678 = vadd.f32 %v666, %v677
    %679 = vst [vmem:[%s2] sm:$0xff] %v678
    // Predicated region
    $region14: #{quantum_layer_forward.1} parent=1 // pred_check
      _
    $region15: #{quantum_layer_forward.1} parent=1 // pred_check_branch
      %681 = sbr.rel (0) target = $region17
    $region16: #{quantum_layer_forward.1} parent=1 // pred_region
      _
    $region17: #{quantum_layer_forward.1} parent=1 // pred_fallthru
      _
    // Predicated region
    $region18: #{quantum_layer_forward.1} parent=1 // pred_check
      _
    $region19: #{quantum_layer_forward.1} parent=1 // pred_check_branch
      %683 = sbr.rel (0) target = $region21
    $region20: #{quantum_layer_forward.1} parent=1 // pred_region
      _
    $region21: #{quantum_layer_forward.1} parent=1 // pred_fallthru
      _
    %684 = vsyncpa [#allocation3], 1

</llo_original>
